<compile_context>
chip_gen: v5e
topology: v5e:2x2
jax: 0.10.0
libtpu: 0.0.40
codegen_flags: <defaults>
</compile_context>

<pallas_src>
import functools

import jax
import jax.numpy as jnp
from jax.experimental import pallas as pl
from jax.experimental.pallas import tpu as pltpu

# Module-level dims implied by the PyTorch module's globals (kept small).
TEXT_DIM = 32
VISUAL_DIM = 16
ACOUSTIC_DIM = 16
HIDDEN_SIZE = TEXT_DIM  # LayerNorm(hidden_size) applies to TEXT_DIM vectors

LN_EPS = 1e-5  # torch.nn.LayerNorm default eps
EPS = 1e-6     # eps used in forward()


def _round_up(x, m):
    return ((x + m - 1) // m) * m


def mag_kernel(text_ref, vis_ref, aco_ref, w_ref, bias_ref, ln_ref,
               bshift_ref, out_ref):
    T, V, A = TEXT_DIM, VISUAL_DIM, ACOUSTIC_DIM
    beta_shift = bshift_ref[0]                        # SMEM scalar, hoisted

    text = text_ref[...].astype(jnp.float32)          # (TM, T)
    vis = vis_ref[...].astype(jnp.float32)            # (TM, V)
    aco = aco_ref[...].astype(jnp.float32)            # (TM, A)

    # Fused matmuls into one 128-lane-wide accumulator:
    #   p[:, 0:T]   = W_hv(cat(visual, text)) pre-activation
    #   p[:, T:2T]  = W_ha(cat(acoustic, text)) pre-activation
    #   p[:, 2T:3T] = W_v(visual)
    #   p[:, 3T:4T] = W_a(acoustic)
    p = jnp.dot(text, w_ref[0:T, :], preferred_element_type=jnp.float32)
    p = p + jnp.dot(vis, w_ref[T:T + V, :], preferred_element_type=jnp.float32)
    p = p + jnp.dot(aco, w_ref[T + V:T + V + A, :],
                    preferred_element_type=jnp.float32)
    p = p + bias_ref[...]                             # (1, 4T) broadcast

    # Gate/value product in full 64-lane vregs (fewer 32-lane sub-slices).
    gate = jnp.maximum(p[:, 0:2 * T], 0.0)            # [weight_v | weight_a]
    prod = gate * p[:, 2 * T:4 * T]                   # [wv*h_v   | wa*h_a  ]
    h_m = prod[:, 0:T] + prod[:, T:2 * T]

    # L2 norms along the feature axis (zero-guard on the squared sum).
    em_norm = jnp.sqrt(jnp.sum(text * text, axis=-1, keepdims=True))
    hm_sq = jnp.sum(h_m * h_m, axis=-1, keepdims=True)
    hm_norm = jnp.sqrt(jnp.where(hm_sq == 0.0, 1.0, hm_sq))

    # approx=False keeps alpha bit-close to the reference near the min() clamp;
    # the per-row divide is invisible next to HBM traffic anyway.
    thresh = em_norm * pl.reciprocal(hm_norm + EPS, approx=False) * beta_shift
    alpha = jnp.minimum(thresh, 1.0)                  # (TM, 1)

    x = alpha * h_m + text

    # LayerNorm over the last dim.
    mean = jnp.mean(x, axis=-1, keepdims=True)
    cen = x - mean
    var = jnp.mean(cen * cen, axis=-1, keepdims=True)
    y = cen * jax.lax.rsqrt(var + LN_EPS) * ln_ref[0, :] + ln_ref[1, :]

    # dropout: identity in eval mode
    # TODO(synk): lane-dense folded store ((tile,32)->(tile//4,128)) skipped:
    # needs a bundle-dump check that the fold lowers to an XLU relayout and
    # not a VMEM round-trip; the HBM writeback is already contiguous here.
    out_ref[...] = y.astype(out_ref.dtype)


@functools.partial(jax.jit, static_argnames=("row_tile",))
def mag_forward(text_embedding, visual, acoustic, packed, row_tile=4096):
    B, S, T = text_embedding.shape
    V = visual.shape[-1]
    A = acoustic.shape[-1]
    N = B * S

    # Row tile: multiple of 8, capped at round_up(N, 8) so small inputs use a
    # single minimal block.  Default 4096 amortizes the ~0.35 us per-step cost
    # (~1.5 MiB of HBM per step) while fitting v7x's 64 MiB VMEM under the
    # 48 MiB scoped limit below; sweep up to 8192 on v5e/v6e.
    tile = max(8, min(_round_up(row_tile, 8), _round_up(N, 8)))
    grid = ((N + tile - 1) // tile,)

    # Free reshapes (contiguous); no jnp.pad — ragged N handled by the
    # partial last block (masked boundary stores).
    text2 = text_embedding.reshape(N, T)
    vis2 = visual.reshape(N, V)
    aco2 = acoustic.reshape(N, A)

    row_spec = lambda d: pl.BlockSpec((tile, d), lambda i: (i, 0))
    full_spec = lambda shape: pl.BlockSpec(shape, lambda i: (0, 0))

    out = pl.pallas_call(
        mag_kernel,
        out_shape=jax.ShapeDtypeStruct((N, T), text_embedding.dtype),
        grid=grid,
        in_specs=[
            row_spec(T),                                # text
            row_spec(V),                                # visual
            row_spec(A),                                # acoustic
            full_spec((T + V + A, 4 * T)),              # fused weight slab
            full_spec((1, 4 * T)),                      # fused biases
            full_spec((2, T)),                          # LayerNorm gamma/beta
            pl.BlockSpec(memory_space=pltpu.SMEM),      # beta_shift scalar
        ],
        out_specs=pl.BlockSpec((tile, T), lambda i: (i, 0)),
        compiler_params=pltpu.CompilerParams(
            dimension_semantics=("parallel",),
            vmem_limit_bytes=48 * 1024 * 1024,
        ),
    )(text2, vis2, aco2,
      packed["w_all"], packed["bias_all"], packed["ln_affine"],
      packed["beta_shift"])

    return out.reshape(B, S, T)


def init_params(key, beta_shift_value=1.0):
    """Deterministic parameter init matching the PyTorch module's shapes."""
    ks = jax.random.split(key, 8)

    def linear(kw, kb, fan_in, fan_out):
        bound = 1.0 / jnp.sqrt(fan_in)
        # stored pre-transposed: (fan_in, fan_out)
        w = jax.random.uniform(kw, (fan_in, fan_out), jnp.float32, -bound, bound)
        b = jax.random.uniform(kb, (1, fan_out), jnp.float32, -bound, bound)
        return w, b

    w_hv, b_hv = linear(ks[0], ks[1], VISUAL_DIM + TEXT_DIM, TEXT_DIM)
    w_ha, b_ha = linear(ks[2], ks[3], ACOUSTIC_DIM + TEXT_DIM, TEXT_DIM)
    w_v, b_v = linear(ks[4], ks[5], VISUAL_DIM, TEXT_DIM)
    w_a, b_a = linear(ks[6], ks[7], ACOUSTIC_DIM, TEXT_DIM)

    return {
        "w_hv": w_hv, "b_hv": b_hv,
        "w_ha": w_ha, "b_ha": b_ha,
        "w_v": w_v, "b_v": b_v,
        "w_a": w_a, "b_a": b_a,
        "ln_gamma": jnp.ones((1, HIDDEN_SIZE), jnp.float32),
        "ln_beta": jnp.zeros((1, HIDDEN_SIZE), jnp.float32),
        "beta_shift": jnp.array([beta_shift_value], jnp.float32),
    }


def pack_params(p):
    """Fuse the 4 linear layers + LayerNorm affine into 3 slabs for the kernel.

    Fused weight slab layout (rows = input features, cols = 4*T outputs):
      rows 0:T      -> text rows:    cols[0:T]=W_hv(text part), cols[T:2T]=W_ha(text part)
      rows T:T+V    -> visual rows:  cols[0:T]=W_hv(vis part),  cols[2T:3T]=W_v
      rows T+V:..   -> acoustic rows:cols[T:2T]=W_ha(aco part), cols[3T:4T]=W_a
    Zero blocks cost nothing extra on the MXU at these tiny dims.
    """
    T, V, A = TEXT_DIM, VISUAL_DIM, ACOUSTIC_DIM
    w_all = jnp.zeros((T + V + A, 4 * T), jnp.float32)
    w_all = w_all.at[:T, 0:T].set(p["w_hv"][V:, :])
    w_all = w_all.at[:T, T:2 * T].set(p["w_ha"][A:, :])
    w_all = w_all.at[T:T + V, 0:T].set(p["w_hv"][:V, :])
    w_all = w_all.at[T:T + V, 2 * T:3 * T].set(p["w_v"])
    w_all = w_all.at[T + V:, T:2 * T].set(p["w_ha"][:A, :])
    w_all = w_all.at[T + V:, 3 * T:4 * T].set(p["w_a"])

    bias_all = jnp.concatenate(
        [p["b_hv"], p["b_ha"], p["b_v"], p["b_a"]], axis=-1)       # (1, 4T)
    ln_affine = jnp.concatenate([p["ln_gamma"], p["ln_beta"]], axis=0)  # (2, T)

    return {"w_all": w_all, "bias_all": bias_all, "ln_affine": ln_affine,
            "beta_shift": p["beta_shift"]}


def mag_reference(text_embedding, visual, acoustic, params):
    """Plain-JAX reference implementation (mirrors the PyTorch forward)."""
    p = params
    weight_v = jax.nn.relu(
        jnp.concatenate([visual, text_embedding], -1) @ p["w_hv"] + p["b_hv"])
    weight_a = jax.nn.relu(
        jnp.concatenate([acoustic, text_embedding], -1) @ p["w_ha"] + p["b_ha"])
    h_m = weight_v * (visual @ p["w_v"] + p["b_v"]) + \
        weight_a * (acoustic @ p["w_a"] + p["b_a"])
    em_norm = jnp.linalg.norm(text_embedding, axis=-1)
    hm_norm = jnp.linalg.norm(h_m, axis=-1)
    hm_norm = jnp.where(hm_norm == 0, jnp.ones_like(hm_norm), hm_norm)
    thresh = em_norm / (hm_norm + EPS) * p["beta_shift"][0]
    alpha = jnp.minimum(thresh, 1.0)[..., None]
    x = alpha * h_m + text_embedding
    mean = jnp.mean(x, -1, keepdims=True)
    var = jnp.mean((x - mean) ** 2, -1, keepdims=True)
    return (x - mean) / jnp.sqrt(var + LN_EPS) * p["ln_gamma"] + p["ln_beta"]


if __name__ == "__main__":
    key = jax.random.PRNGKey(0)
    k_t, k_v, k_a, k_p = jax.random.split(key, 4)

    params = init_params(k_p, beta_shift_value=1.0)
    packed = pack_params(params)

    # Case 1: small even shape (single block, no OOB rows).
    B, S = 2, 8
    text = jax.random.normal(k_t, (B, S, TEXT_DIM), jnp.float32)
    visual = jax.random.normal(k_v, (B, S, VISUAL_DIM), jnp.float32)
    acoustic = jax.random.normal(k_a, (B, S, ACOUSTIC_DIM), jnp.float32)

    out = mag_forward(text, visual, acoustic, packed)
    jax.block_until_ready(out)
    ref = mag_reference(text, visual, acoustic, params)
    assert out.shape == (B, S, TEXT_DIM)
    assert jnp.allclose(out, ref, atol=1e-4, rtol=1e-4), "mismatch vs reference"

    # Case 2: ragged row count, single partial block (masked boundary store).
    B2, S2 = 3, 5
    text2 = jax.random.normal(k_t, (B2, S2, TEXT_DIM), jnp.float32)
    visual2 = jax.random.normal(k_v, (B2, S2, VISUAL_DIM), jnp.float32)
    acoustic2 = jax.random.normal(k_a, (B2, S2, ACOUSTIC_DIM), jnp.float32)

    out2 = mag_forward(text2, visual2, acoustic2, packed)
    jax.block_until_ready(out2)
    ref2 = mag_reference(text2, visual2, acoustic2, params)
    assert out2.shape == (B2, S2, TEXT_DIM)
    assert jnp.allclose(out2, ref2, atol=1e-4, rtol=1e-4), "mismatch (ragged)"

    # Case 3: multi-step grid with a partial last block (N=500, tile=128 -> 4 steps).
    B3, S3 = 4, 125
    text3 = jax.random.normal(k_t, (B3, S3, TEXT_DIM), jnp.float32)
    visual3 = jax.random.normal(k_v, (B3, S3, VISUAL_DIM), jnp.float32)
    acoustic3 = jax.random.normal(k_a, (B3, S3, ACOUSTIC_DIM), jnp.float32)

    out3 = mag_forward(text3, visual3, acoustic3, packed, row_tile=128)
    jax.block_until_ready(out3)
    ref3 = mag_reference(text3, visual3, acoustic3, params)
    assert out3.shape == (B3, S3, TEXT_DIM)
    assert jnp.allclose(out3, ref3, atol=1e-4, rtol=1e-4), "mismatch (multi-block)"

    print("KERNEL_OK")
</pallas_src>

<mosaic_0001>
module attributes {stable_mosaic.version = 11 : i64} {
  func.func @mag_kernel(%arg0: i32, %arg1: memref<16x32xf32, #tpu.memory_space<vmem>>, %arg2: memref<16x16xf32, #tpu.memory_space<vmem>>, %arg3: memref<16x16xf32, #tpu.memory_space<vmem>>, %arg4: memref<64x128xf32, #tpu.memory_space<vmem>>, %arg5: memref<1x128xf32, #tpu.memory_space<vmem>>, %arg6: memref<2x32xf32, #tpu.memory_space<vmem>>, %arg7: memref<1xf32, #tpu.memory_space<smem>>, %arg8: memref<16x32xf32, #tpu.memory_space<vmem>>) attributes {dimension_semantics = [#tpu.dimension_semantics<parallel>], iteration_bounds = array<i64: 1>, scalar_prefetch = 0 : i64, scratch_operands = 0 : i64, tpu.core_type = #tpu.core_type<tc>, window_params = [{transform_indices = @transform_0, window_bounds = array<i64: 16, 32>}, {transform_indices = @transform_1, window_bounds = array<i64: 16, 16>}, {transform_indices = @transform_2, window_bounds = array<i64: 16, 16>}, {pipeline_mode = #tpu.pipeline_mode<synchronous>, transform_indices = @transform_3, window_bounds = array<i64: 64, 128>}, {pipeline_mode = #tpu.pipeline_mode<synchronous>, transform_indices = @transform_4, window_bounds = array<i64: 1, 128>}, {pipeline_mode = #tpu.pipeline_mode<synchronous>, transform_indices = @transform_5, window_bounds = array<i64: 2, 32>}, {transform_indices = @transform_6, window_bounds = array<i64: 1>}, {transform_indices = @transform_7, window_bounds = array<i64: 16, 32>}]} {
    %c0 = arith.constant 0 : index
    %0 = memref.load %arg7[%c0] : memref<1xf32, #tpu.memory_space<smem>>
    %c0_0 = arith.constant 0 : index
    %c0_1 = arith.constant 0 : index
    %1 = vector.load %arg1[%c0_0, %c0_1] : memref<16x32xf32, #tpu.memory_space<vmem>>, vector<16x32xf32>
    %c0_2 = arith.constant 0 : index
    %c0_3 = arith.constant 0 : index
    %2 = vector.load %arg2[%c0_2, %c0_3] : memref<16x16xf32, #tpu.memory_space<vmem>>, vector<16x16xf32>
    %c0_4 = arith.constant 0 : index
    %c0_5 = arith.constant 0 : index
    %3 = vector.load %arg3[%c0_4, %c0_5] : memref<16x16xf32, #tpu.memory_space<vmem>>, vector<16x16xf32>
    %c0_6 = arith.constant 0 : index
    %c0_7 = arith.constant 0 : index
    %4 = vector.load %arg4[%c0_6, %c0_7] : memref<64x128xf32, #tpu.memory_space<vmem>>, vector<32x128xf32>
    %cst = arith.constant dense<0.000000e+00> : vector<16x128xf32>
    %5 = tpu.matmul %1, %4, %cst {dimension_numbers = #tpu.dot_dimension_numbers<[1], [0], [0], [1], [0, 0, 1, 1], [], []>} : vector<16x32xf32>, vector<32x128xf32>, vector<16x128xf32> -> vector<16x128xf32>
    %c32 = arith.constant 32 : index
    %c0_8 = arith.constant 0 : index
    %6 = vector.load %arg4[%c32, %c0_8] : memref<64x128xf32, #tpu.memory_space<vmem>>, vector<16x128xf32>
    %cst_9 = arith.constant dense<0.000000e+00> : vector<16x128xf32>
    %7 = tpu.matmul %2, %6, %cst_9 {dimension_numbers = #tpu.dot_dimension_numbers<[1], [0], [0], [1], [0, 0, 1, 1], [], []>} : vector<16x16xf32>, vector<16x128xf32>, vector<16x128xf32> -> vector<16x128xf32>
    %8 = arith.addf %5, %7 : vector<16x128xf32>
    %c48 = arith.constant 48 : index
    %c0_10 = arith.constant 0 : index
    %9 = vector.load %arg4[%c48, %c0_10] : memref<64x128xf32, #tpu.memory_space<vmem>>, vector<16x128xf32>
    %cst_11 = arith.constant dense<0.000000e+00> : vector<16x128xf32>
    %10 = tpu.matmul %3, %9, %cst_11 {dimension_numbers = #tpu.dot_dimension_numbers<[1], [0], [0], [1], [0, 0, 1, 1], [], []>} : vector<16x16xf32>, vector<16x128xf32>, vector<16x128xf32> -> vector<16x128xf32>
    %11 = arith.addf %8, %10 : vector<16x128xf32>
    %c0_12 = arith.constant 0 : index
    %c0_13 = arith.constant 0 : index
    %12 = vector.load %arg5[%c0_12, %c0_13] : memref<1x128xf32, #tpu.memory_space<vmem>>, vector<1x128xf32>
    %13 = vector.broadcast %12 : vector<1x128xf32> to vector<16x128xf32>
    %14 = arith.addf %11, %13 : vector<16x128xf32>
    %15 = vector.extract_strided_slice %14 {offsets = [0, 0], sizes = [16, 64], strides = [1, 1]} : vector<16x128xf32> to vector<16x64xf32>
    %cst_14 = arith.constant 0.000000e+00 : f32
    %16 = vector.broadcast %cst_14 : f32 to vector<16x64xf32>
    %17 = arith.maximumf %15, %16 : vector<16x64xf32>
    %18 = vector.extract_strided_slice %14 {offsets = [0, 64], sizes = [16, 64], strides = [1, 1]} : vector<16x128xf32> to vector<16x64xf32>
    %19 = arith.mulf %17, %18 : vector<16x64xf32>
    %20 = vector.extract_strided_slice %19 {offsets = [0, 0], sizes = [16, 32], strides = [1, 1]} : vector<16x64xf32> to vector<16x32xf32>
    %21 = vector.extract_strided_slice %19 {offsets = [0, 32], sizes = [16, 32], strides = [1, 1]} : vector<16x64xf32> to vector<16x32xf32>
    %22 = arith.addf %20, %21 : vector<16x32xf32>
    %23 = arith.mulf %1, %1 : vector<16x32xf32>
    %cst_15 = arith.constant dense<0.000000e+00> : vector<16xf32>
    %24 = vector.multi_reduction <add>, %23, %cst_15 [1] : vector<16x32xf32> to vector<16xf32>
    %25 = vector.shape_cast %24 : vector<16xf32> to vector<16x1xf32>
    %26 = math.sqrt %25 : vector<16x1xf32>
    %27 = arith.mulf %22, %22 : vector<16x32xf32>
    %cst_16 = arith.constant dense<0.000000e+00> : vector<16xf32>
    %28 = vector.multi_reduction <add>, %27, %cst_16 [1] : vector<16x32xf32> to vector<16xf32>
    %29 = vector.shape_cast %28 : vector<16xf32> to vector<16x1xf32>
    %cst_17 = arith.constant 0.000000e+00 : f32
    %30 = vector.broadcast %cst_17 : f32 to vector<16x1xf32>
    %31 = arith.cmpf oeq, %29, %30 : vector<16x1xf32>
    %cst_18 = arith.constant 1.000000e+00 : f32
    %32 = vector.broadcast %cst_18 : f32 to vector<16x1xf32>
    %33 = arith.select %31, %32, %29 : vector<16x1xi1>, vector<16x1xf32>
    %34 = math.sqrt %33 : vector<16x1xf32>
    %cst_19 = arith.constant 9.99999997E-7 : f32
    %35 = vector.broadcast %cst_19 : f32 to vector<16x1xf32>
    %36 = arith.addf %34, %35 : vector<16x1xf32>
    %37 = tpu.reciprocal %36 : vector<16x1xf32> -> vector<16x1xf32>
    %38 = arith.mulf %26, %37 : vector<16x1xf32>
    %39 = vector.broadcast %0 : f32 to vector<16x1xf32>
    %40 = arith.mulf %38, %39 : vector<16x1xf32>
    %cst_20 = arith.constant 1.000000e+00 : f32
    %41 = vector.broadcast %cst_20 : f32 to vector<16x1xf32>
    %42 = arith.minimumf %40, %41 : vector<16x1xf32>
    %43 = vector.broadcast %42 : vector<16x1xf32> to vector<16x32xf32>
    %44 = arith.mulf %43, %22 : vector<16x32xf32>
    %45 = arith.addf %44, %1 : vector<16x32xf32>
    %cst_21 = arith.constant dense<0.000000e+00> : vector<16xf32>
    %46 = vector.multi_reduction <add>, %45, %cst_21 [1] : vector<16x32xf32> to vector<16xf32>
    %47 = vector.shape_cast %46 : vector<16xf32> to vector<16x1xf32>
    %cst_22 = arith.constant 3.200000e+01 : f32
    %48 = vector.broadcast %cst_22 : f32 to vector<16x1xf32>
    %49 = arith.divf %47, %48 : vector<16x1xf32>
    %50 = vector.broadcast %49 : vector<16x1xf32> to vector<16x32xf32>
    %51 = arith.subf %45, %50 : vector<16x32xf32>
    %52 = arith.mulf %51, %51 : vector<16x32xf32>
    %cst_23 = arith.constant dense<0.000000e+00> : vector<16xf32>
    %53 = vector.multi_reduction <add>, %52, %cst_23 [1] : vector<16x32xf32> to vector<16xf32>
    %54 = vector.shape_cast %53 : vector<16xf32> to vector<16x1xf32>
    %cst_24 = arith.constant 3.200000e+01 : f32
    %55 = vector.broadcast %cst_24 : f32 to vector<16x1xf32>
    %56 = arith.divf %54, %55 : vector<16x1xf32>
    %cst_25 = arith.constant 9.99999974E-6 : f32
    %57 = vector.broadcast %cst_25 : f32 to vector<16x1xf32>
    %58 = arith.addf %56, %57 : vector<16x1xf32>
    %59 = math.rsqrt %58 : vector<16x1xf32>
    %60 = vector.broadcast %59 : vector<16x1xf32> to vector<16x32xf32>
    %61 = arith.mulf %51, %60 : vector<16x32xf32>
    %c0_26 = arith.constant 0 : index
    %c0_27 = arith.constant 0 : index
    %62 = vector.load %arg6[%c0_26, %c0_27] : memref<2x32xf32, #tpu.memory_space<vmem>>, vector<1x32xf32>
    %63 = vector.shape_cast %62 : vector<1x32xf32> to vector<32xf32>
    %64 = vector.shape_cast %63 : vector<32xf32> to vector<1x32xf32>
    %65 = vector.broadcast %64 : vector<1x32xf32> to vector<16x32xf32>
    %66 = arith.mulf %61, %65 : vector<16x32xf32>
    %c1 = arith.constant 1 : index
    %c0_28 = arith.constant 0 : index
    %67 = vector.load %arg6[%c1, %c0_28] : memref<2x32xf32, #tpu.memory_space<vmem>>, vector<1x32xf32>
    %68 = vector.shape_cast %67 : vector<1x32xf32> to vector<32xf32>
    %69 = vector.shape_cast %68 : vector<32xf32> to vector<1x32xf32>
    %70 = vector.broadcast %69 : vector<1x32xf32> to vector<16x32xf32>
    %71 = arith.addf %66, %70 : vector<16x32xf32>
    %c0_29 = arith.constant 0 : index
    %c0_30 = arith.constant 0 : index
    %72 = vector.load %arg8[%c0_29, %c0_30] : memref<16x32xf32, #tpu.memory_space<vmem>>, vector<16x32xf32>
    tpu.vector_store %arg8[%c0_29, %c0_30], %71 {strides = array<i32>} : memref<16x32xf32, #tpu.memory_space<vmem>>, vector<16x32xf32>,
    return
  }
  func.func @transform_0(%arg0: i32) -> (i32, i32) {
    %c0_i32 = arith.constant 0 : i32
    %c0_i32_0 = arith.constant 0 : i32
    return %arg0, %c0_i32 : i32, i32
  }
  func.func @transform_1(%arg0: i32) -> (i32, i32) {
    %c0_i32 = arith.constant 0 : i32
    %c0_i32_0 = arith.constant 0 : i32
    return %arg0, %c0_i32 : i32, i32
  }
  func.func @transform_2(%arg0: i32) -> (i32, i32) {
    %c0_i32 = arith.constant 0 : i32
    %c0_i32_0 = arith.constant 0 : i32
    return %arg0, %c0_i32 : i32, i32
  }
  func.func @transform_3(%arg0: i32) -> (i32, i32) {
    %c0_i32 = arith.constant 0 : i32
    %c0_i32_0 = arith.constant 0 : i32
    %c0_i32_1 = arith.constant 0 : i32
    return %c0_i32, %c0_i32_0 : i32, i32
  }
  func.func @transform_4(%arg0: i32) -> (i32, i32) {
    %c0_i32 = arith.constant 0 : i32
    %c0_i32_0 = arith.constant 0 : i32
    %c0_i32_1 = arith.constant 0 : i32
    return %c0_i32, %c0_i32_0 : i32, i32
  }
  func.func @transform_5(%arg0: i32) -> (i32, i32) {
    %c0_i32 = arith.constant 0 : i32
    %c0_i32_0 = arith.constant 0 : i32
    %c0_i32_1 = arith.constant 0 : i32
    return %c0_i32, %c0_i32_0 : i32, i32
  }
  func.func @transform_6(%arg0: i32) -> i32 {
    %c0_i32 = arith.constant 0 : i32
    %c0_i32_0 = arith.constant 0 : i32
    return %c0_i32 : i32
  }
  func.func @transform_7(%arg0: i32) -> (i32, i32) {
    %c0_i32 = arith.constant 0 : i32
    %c0_i32_0 = arith.constant 0 : i32
    return %arg0, %c0_i32 : i32, i32
  }
}

</mosaic_0001>

<llo_original>
// kernel: mag_forward.1
$region0: #{mag_forward.1}
  #allocation0 [shape = 'u32[]', space=smem, size = 0x4, offset = 0x4, fixed_abs, tag = 'smem constant byte address 0x4 - core index']
  #allocation1 [shape = 'u32[72,128]{1,0:T(1,128)}', space=vmem, size = 0x9000, scoped, tag = 'internal scratch']
  #allocation2 [shape = 'f32[1]{0:T(128)S(6)}', space=smem, size = 0x200, scoped, tag = 'scoped memory for mag_forward.1']
  %s0 = inlined_call_operand.hbm [shape: f32[16,32], index: 0, kind: input, shape index: {}]
  %s1 = inlined_call_operand.hbm [shape: f32[16,16], index: 1, kind: input, shape index: {}]
  %s2 = inlined_call_operand.hbm [shape: f32[16,16], index: 2, kind: input, shape index: {}]
  %s3 = inlined_call_operand.hbm [shape: f32[64,128], index: 3, kind: input, shape index: {}]
  %s4 = inlined_call_operand.vmem [shape: f32[1,128], index: 4, kind: input, shape index: {}]
  %s5 = inlined_call_operand.vmem [shape: f32[2,32], index: 5, kind: input, shape index: {}]
  %s6 = inlined_call_operand.<no memory space> [shape: f32[1], index: 6, kind: input, shape index: {}]
  %s7 = inlined_call_operand.hbm [shape: f32[16,32], index: 7, kind: output, shape index: {}]
  %s8 = sld [smem:[#allocation0]]
  $region54: #{mag_forward.1} parent=0
    _
  %s10 = ssub.s32 1, %s8
  %s11 = scalar_select 0, %s10, %s8
  %12 = sst [smem:[#allocation2]] %s6
  $region1: #{mag_forward.1} parent=0
    #allocation3 [shape = 'u8[8192]{0}', space=vmem, size = 0x2000, scoped, tag = 'input window, operand 0, single buffered']
    #allocation4 [shape = 's32[1]{0}', space=sflag, size = 0x4, scoped, tag = 'scoped memory for mag_forward.1']
    #allocation5 [shape = 's32[1]{0}', space=sflag, size = 0x4, scoped, tag = 'scoped memory for mag_forward.1']
    #allocation6 [shape = 'u8[8192]{0}', space=vmem, size = 0x2000, scoped, tag = 'input window, operand 1, single buffered']
    #allocation7 [shape = 's32[1]{0}', space=sflag, size = 0x4, scoped, tag = 'scoped memory for mag_forward.1']
    #allocation8 [shape = 'u8[8192]{0}', space=vmem, size = 0x2000, scoped, tag = 'input window, operand 2, single buffered']
    #allocation9 [shape = 'u8[32768]{0}', space=vmem, size = 0x8000, scoped, tag = 'input window, operand 3, single buffered']
    #allocation10 [shape = 's32[1]{0}', space=sflag, size = 0x4, scoped, tag = 'scoped memory for mag_forward.1']
    #allocation11 [shape = 'u8[8192]{0}', space=vmem, size = 0x2000, scoped, tag = 'output window, operand 0, single buffered']
    %13 = vsyncpa [#allocation4], 0
    %14 = vsyncpa [#allocation7], 0
    %15 = vsyncpa [#allocation10], 0
    %16 = vsyncpa [#allocation5], 0
    // Predicated region
    $region2: #{mag_forward.1} parent=1 // pred_check
      _
    $region3: #{mag_forward.1} parent=1 // pred_check_branch
      %18 = sbr.rel (0) target = $region5
    $region4: #{mag_forward.1} parent=1 // pred_region
      %20 = vsyncadd [#allocation4], 0
      %s21 = sshll.u32 %s0, 4
      %s22 = int_to_ptr.hbm [resolvable:$true] %s21
      %s23 = sshll.u32 [#allocation3], 4
      %s24 = int_to_ptr.vmem [resolvable:$true] %s23
      %29 = dma.hbm_to_vmem [thread:$0]  %s22, 256, %s24, [#allocation4], 128, 128, 8
    $region5: #{mag_forward.1} parent=1 // pred_fallthru
      _
    // Predicated region
    $region6: #{mag_forward.1} parent=1 // pred_check
      _
    $region7: #{mag_forward.1} parent=1 // pred_check_branch
      %31 = sbr.rel (0) target = $region9
    $region8: #{mag_forward.1} parent=1 // pred_region
      %33 = vsyncadd [#allocation7], 0
      %s34 = sshll.u32 %s1, 4
      %s35 = int_to_ptr.hbm [resolvable:$true] %s34
      %s36 = sshll.u32 [#allocation6], 4
      %s37 = int_to_ptr.vmem [resolvable:$true] %s36
      %42 = dma.hbm_to_vmem [thread:$0]  %s35, 256, %s37, [#allocation7], 128, 128, 8
    $region9: #{mag_forward.1} parent=1 // pred_fallthru
      _
    // Predicated region
    $region10: #{mag_forward.1} parent=1 // pred_check
      _
    $region11: #{mag_forward.1} parent=1 // pred_check_branch
      %44 = sbr.rel (0) target = $region13
    $region12: #{mag_forward.1} parent=1 // pred_region
      %46 = vsyncadd [#allocation7], 0
      %s47 = sshll.u32 %s2, 4
      %s48 = int_to_ptr.hbm [resolvable:$true] %s47
      %s49 = sshll.u32 [#allocation8], 4
      %s50 = int_to_ptr.vmem [resolvable:$true] %s49
      %55 = dma.hbm_to_vmem [thread:$0]  %s48, 256, %s50, [#allocation7], 128, 128, 8
    $region13: #{mag_forward.1} parent=1 // pred_fallthru
      _
    // Predicated region
    $region14: #{mag_forward.1} parent=1 // pred_check
      _
    $region15: #{mag_forward.1} parent=1 // pred_check_branch
      %57 = sbr.rel (0) target = $region17
    $region16: #{mag_forward.1} parent=1 // pred_region
      %59 = vsyncadd [#allocation10], 0
      %s60 = sshll.u32 %s3, 4
      %s61 = int_to_ptr.hbm [resolvable:$true] %s60
      %s62 = sshll.u32 [#allocation9], 4
      %s63 = int_to_ptr.vmem [resolvable:$true] %s62
      %68 = dma.hbm_to_vmem [thread:$0]  %s61, 1024, %s63, [#allocation10], 128, 128, 8
    $region17: #{mag_forward.1} parent=1 // pred_fallthru
      _
    // Predicated region
    $region18: #{mag_forward.1} parent=1 // pred_check
      _
    $region19: #{mag_forward.1} parent=1 // pred_check_branch
      %70 = sbr.rel (0) target = $region21
    $region20: #{mag_forward.1} parent=1 // pred_region
      _
    $region21: #{mag_forward.1} parent=1 // pred_fallthru
      _
    // Predicated region
    $region22: #{mag_forward.1} parent=1 // pred_check
      _
    $region23: #{mag_forward.1} parent=1 // pred_check_branch
      %72 = sbr.rel (0) target = $region25
    $region24: #{mag_forward.1} parent=1 // pred_region
      _
    $region25: #{mag_forward.1} parent=1 // pred_fallthru
      _
    // Predicated region
    $region26: #{mag_forward.1} parent=1 // pred_check
      _
    $region27: #{mag_forward.1} parent=1 // pred_check_branch
      %74 = sbr.rel (0) target = $region29
    $region28: #{mag_forward.1} parent=1 // pred_region
      _
    $region29: #{mag_forward.1} parent=1 // pred_fallthru
      _
    // Predicated region
    $region30: #{mag_forward.1} parent=1 // pred_check
      _
    $region31: #{mag_forward.1} parent=1 // pred_check_branch
      %76 = sbr.rel (0) target = $region33
    $region32: #{mag_forward.1} parent=1 // pred_region
      %78 = dma.done [#allocation4], 256
    $region33: #{mag_forward.1} parent=1 // pred_fallthru
      _
    // Predicated region
    $region34: #{mag_forward.1} parent=1 // pred_check
      _
    $region35: #{mag_forward.1} parent=1 // pred_check_branch
      %80 = sbr.rel (0) target = $region37
    $region36: #{mag_forward.1} parent=1 // pred_region
      %82 = dma.done [#allocation7], 256
    $region37: #{mag_forward.1} parent=1 // pred_fallthru
      _
    // Predicated region
    $region38: #{mag_forward.1} parent=1 // pred_check
      _
    $region39: #{mag_forward.1} parent=1 // pred_check_branch
      %84 = sbr.rel (0) target = $region41
    $region40: #{mag_forward.1} parent=1 // pred_region
      %86 = dma.done [#allocation7], 256
    $region41: #{mag_forward.1} parent=1 // pred_fallthru
      _
    // Predicated region
    $region42: #{mag_forward.1} parent=1 // pred_check
      _
    $region43: #{mag_forward.1} parent=1 // pred_check_branch
      %88 = sbr.rel (0) target = $region45
    $region44: #{mag_forward.1} parent=1 // pred_region
      %90 = dma.done [#allocation10], 1024
    $region45: #{mag_forward.1} parent=1 // pred_fallthru
      _
    %s91 = sld [smem:[#allocation2]]
    %v92 = vld [vmem:[#allocation3] sm:$0xff]
    %v93 = vld [vmem:[#allocation3 + $0x8] sm:$0xff]
    %v94 = vld [vmem:[#allocation6] sm:$0xff]
    %v95 = vld [vmem:[#allocation6 + $0x8] sm:$0xff]
    %v96 = vld [vmem:[#allocation8] sm:$0xff]
    %v97 = vld [vmem:[#allocation8 + $0x8] sm:$0xff]
    %v98 = vld [vmem:[#allocation9] sm:$0xff]
    %v99 = vld [vmem:[#allocation9 + $0x8] sm:$0xff]
    %v100 = vld [vmem:[#allocation9 + $0x10] sm:$0xff]
    %v101 = vld [vmem:[#allocation9 + $0x18] sm:$0xff]
    %v102 = vld [vmem:[#allocation9 + $0x20] sm:$0xff]
    %v103 = vld [vmem:[#allocation9 + $0x28] sm:$0xff]
    %vm104 = vcmask 130048
    %v106 = vsel %vm104, %v94, 0
    %v109 = vsel %vm104, %v95, 0
    %111 = vmatpush.msra.mxu0 0.0
    %112 = vmatpush.msra.mxu0 0.0
    %113 = vmatpush.msra.mxu0 0.0
    %114 = vmatpush.msra.mxu0 0.0
    %115 = vmatpush.msra.mxu0 0.0
    %116 = vmatpush.msra.mxu0 0.0
    %117 = vmatpush.msra.mxu0 0.0
    %118 = vmatpush.msra.mxu0 0.0
    %119 = vmatpush.msra.mxu0 0.0
    %120 = vmatpush.msra.mxu0 0.0
    %121 = vmatpush.msra.mxu0 0.0
    %122 = vmatpush.msra.mxu0 0.0
    %123 = vmatpush.msra.mxu0 0.0
    %124 = vmatpush.msra.mxu0 0.0
    %125 = vmatpush.msra.mxu0 %v103
    %126 = vmatpush.msra.mxu0 %v102
    %127 = vmatmul.f32.gmra.mxu0 %v106
    %v128 = vpop.f32.mrf.mxu0
    %v129 = vadd.f32 0.0, %v128
    %130 = vmatmul.f32.gmra.mxu0 %v109
    %v131 = vpop.f32.mrf.mxu0
    %v132 = vadd.f32 0.0, %v131
    %133 = vdwg.mxu0
    %vm134 = vcmask 261120
    %v136 = vsel %vm134, %v92, 0
    %v139 = vsel %vm134, %v93, 0
    %141 = vmatpush.msra.mxu0 0.0
    %142 = vmatpush.msra.mxu0 0.0
    %143 = vmatpush.msra.mxu0 0.0
    %144 = vmatpush.msra.mxu0 0.0
    %145 = vmatpush.msra.mxu0 0.0
    %146 = vmatpush.msra.mxu0 0.0
    %147 = vmatpush.msra.mxu0 0.0
    %148 = vmatpush.msra.mxu0 0.0
    %149 = vmatpush.msra.mxu0 0.0
    %150 = vmatpush.msra.mxu0 0.0
    %151 = vmatpush.msra.mxu0 0.0
    %152 = vmatpush.msra.mxu0 0.0
    %153 = vmatpush.msra.mxu0 %v101
    %154 = vmatpush.msra.mxu0 %v100
    %155 = vmatpush.msra.mxu0 %v99
    %156 = vmatpush.msra.mxu0 %v98
    %157 = vmatmul.f32.gmra.mxu0 %v136
    %v158 = vpop.f32.mrf.mxu0
    %v159 = vadd.f32 %v129, %v158
    %160 = vmatmul.f32.gmra.mxu0 %v139
    %v161 = vpop.f32.mrf.mxu0
    %v162 = vadd.f32 %v132, %v161
    %163 = vdwg.mxu0
    %v164 = vld [vmem:[#allocation9 + $0x30] sm:$0xff]
    %v165 = vld [vmem:[#allocation9 + $0x38] sm:$0xff]
    %v167 = vsel %vm104, %v96, 0
    %v170 = vsel %vm104, %v97, 0
    %172 = vmatpush.msra.mxu0 0.0
    %173 = vmatpush.msra.mxu0 0.0
    %174 = vmatpush.msra.mxu0 0.0
    %175 = vmatpush.msra.mxu0 0.0
    %176 = vmatpush.msra.mxu0 0.0
    %177 = vmatpush.msra.mxu0 0.0
    %178 = vmatpush.msra.mxu0 0.0
    %179 = vmatpush.msra.mxu0 0.0
    %180 = vmatpush.msra.mxu0 0.0
    %181 = vmatpush.msra.mxu0 0.0
    %182 = vmatpush.msra.mxu0 0.0
    %183 = vmatpush.msra.mxu0 0.0
    %184 = vmatpush.msra.mxu0 0.0
    %185 = vmatpush.msra.mxu0 0.0
    %186 = vmatpush.msra.mxu0 %v165
    %187 = vmatpush.msra.mxu0 %v164
    %188 = vmatmul.f32.gmra.mxu0 %v167
    %v189 = vpop.f32.mrf.mxu0
    %v190 = vadd.f32 0.0, %v189
    %191 = vmatmul.f32.gmra.mxu0 %v170
    %v192 = vpop.f32.mrf.mxu0
    %v193 = vadd.f32 0.0, %v192
    %194 = vdwg.mxu0
    %v195 = vadd.f32 %v159, %v190
    %v196 = vadd.f32 %v162, %v193
    %v197 = vld [vmem:[%s4] sm:$0x1]
    %v199 = vperm.slane %v197, 0
    %v201 = vadd.f32 %v195, %v199
    %v202 = vadd.f32 %v196, %v199
    %v203 = vmax.f32 %v201, 0.0
    %v204 = vmax.f32 %v202, 0.0
    %207 = vrot.lane.b32.xlu0 %v201, 64
    %v208 = vpop.permute.xlu0 %207
    %209 = vrot.lane.b32.xlu0 %v202, 64
    %v210 = vpop.permute.xlu0 %209
    %v213 = vmul.f32 %v203, %v208
    %v214 = vmul.f32 %v204, %v210
    %217 = vrot.lane.b32.xlu0 %v213, 96
    %v218 = vpop.permute.xlu0 %217
    %219 = vrot.lane.b32.xlu0 %v214, 96
    %v220 = vpop.permute.xlu0 %219
    %v223 = vadd.f32 %v213, %v218
    %v224 = vadd.f32 %v214, %v220
    %v225 = vmul.f32 %v92, %v92
    %v226 = vmul.f32 %v93, %v93
    %v227 = vsel %vm134, %v225, 0.0
    %228 = vadd.xlane.f32.xlu0 %v227
    %v229 = vpop.xlane.xlu0 %228
    %v230 = vsel %vm134, %v226, 0.0
    %231 = vadd.xlane.f32.xlu0 %v230
    %v232 = vpop.xlane.xlu0 %231
    %v233 = vrsqrt.pop %v229
    %v234 = vmul.f32 %v233, %v229
    %v235 = vmul.f32 %v234, %v233
    %v236 = vmul.f32 0.5, %v235
    %v237 = vsub.f32 1.5, %v236
    %v238 = vmul.f32 %v233, %v237
    %v239 = vmul.f32 %v229, %v238
    %vm240 = vcmp.eq.f32.partialorder %v229, inf
    %v241 = vsel %vm240, %v229, %v239
    %vm242 = vcmp.eq.f32.partialorder %v229, 0.0
    %v243 = vand.u32 %v229, 2147483648
    %v244 = vsel %vm242, %v243, %v241
    %v245 = vrsqrt.pop %v232
    %v246 = vmul.f32 %v245, %v232
    %v247 = vmul.f32 %v246, %v245
    %v248 = vmul.f32 0.5, %v247
    %v249 = vsub.f32 1.5, %v248
    %v250 = vmul.f32 %v245, %v249
    %v251 = vmul.f32 %v232, %v250
    %vm252 = vcmp.eq.f32.partialorder %v232, inf
    %v253 = vsel %vm252, %v232, %v251
    %vm254 = vcmp.eq.f32.partialorder %v232, 0.0
    %v255 = vand.u32 %v232, 2147483648
    %v256 = vsel %vm254, %v255, %v253
    %v257 = vmul.f32 %v223, %v223
    %v258 = vmul.f32 %v224, %v224
    %v259 = vsel %vm134, %v257, 0.0
    %260 = vadd.xlane.f32.xlu0 %v259
    %v261 = vpop.xlane.xlu0 %260
    %v262 = vsel %vm134, %v258, 0.0
    %263 = vadd.xlane.f32.xlu0 %v262
    %v264 = vpop.xlane.xlu0 %263
    %vm265 = vcmp.eq.f32.partialorder %v261, 0.0
    %vm266 = vcmp.eq.f32.partialorder %v264, 0.0
    %v267 = vsel %vm265, 1.0, %v261
    %v268 = vsel %vm266, 1.0, %v264
    %v269 = vrsqrt.pop %v267
    %v270 = vmul.f32 %v269, %v267
    %v271 = vmul.f32 %v270, %v269
    %v272 = vmul.f32 0.5, %v271
    %v273 = vsub.f32 1.5, %v272
    %v274 = vmul.f32 %v269, %v273
    %v275 = vmul.f32 %v267, %v274
    %vm276 = vcmp.eq.f32.partialorder %v267, inf
    %v277 = vsel %vm276, %v267, %v275
    %vm278 = vcmp.eq.f32.partialorder %v267, 0.0
    %v279 = vand.u32 %v267, 2147483648
    %v280 = vsel %vm278, %v279, %v277
    %v281 = vrsqrt.pop %v268
    %v282 = vmul.f32 %v281, %v268
    %v283 = vmul.f32 %v282, %v281
    %v284 = vmul.f32 0.5, %v283
    %v285 = vsub.f32 1.5, %v284
    %v286 = vmul.f32 %v281, %v285
    %v287 = vmul.f32 %v268, %v286
    %vm288 = vcmp.eq.f32.partialorder %v268, inf
    %v289 = vsel %vm288, %v268, %v287
    %vm290 = vcmp.eq.f32.partialorder %v268, 0.0
    %v291 = vand.u32 %v268, 2147483648
    %v292 = vsel %vm290, %v291, %v289
    %v293 = vadd.f32 %v280, 1e-06
    %v294 = vadd.f32 %v292, 1e-06
    %v295 = vrcp.pop %v293
    %v296 = vmul.f32 %v293, %v295
    %v297 = vsub.f32 1.0, %v296
    %v298 = vmul.f32 %v295, %v297
    %v299 = vadd.f32 %v295, %v298
    %vm300 = vweird.f32 %v293
    %vm301 = vweird.f32 %v295
    %vm302 = vmor %vm300, %vm301
    %v303 = vsel %vm302, %v295, %v299
    %v304 = vand.u32 2147483647, %v293
    %vm305 = vcmp.eq.f32.partialorder %v304, 8.507059e+37
    %v306 = vand.u32 %v293, 2147483648
    %v307 = vor.u32 1.1754944e-38, %v306
    %v308 = vsel %vm305, %v307, %v303
    %v309 = vrcp.pop %v294
    %v310 = vmul.f32 %v294, %v309
    %v311 = vsub.f32 1.0, %v310
    %v312 = vmul.f32 %v309, %v311
    %v313 = vadd.f32 %v309, %v312
    %vm314 = vweird.f32 %v294
    %vm315 = vweird.f32 %v309
    %vm316 = vmor %vm314, %vm315
    %v317 = vsel %vm316, %v309, %v313
    %v318 = vand.u32 2147483647, %v294
    %vm319 = vcmp.eq.f32.partialorder %v318, 8.507059e+37
    %v320 = vand.u32 %v294, 2147483648
    %v321 = vor.u32 1.1754944e-38, %v320
    %v322 = vsel %vm319, %v321, %v317
    %v323 = vmul.f32 %v244, %v308
    %v324 = vmul.f32 %v256, %v322
    %v325 = vstv %s91
    %v326 = vmul.f32 %v323, %v325
    %v327 = vmul.f32 %v324, %v325
    %v328 = vmin.f32 %v326, 1.0
    %v329 = vmin.f32 %v327, 1.0
    %v330 = vmul.f32 %v328, %v223
    %v331 = vmul.f32 %v329, %v224
    %v332 = vadd.f32 %v330, %v92
    %v333 = vadd.f32 %v331, %v93
    %v334 = vsel %vm134, %v332, 0.0
    %335 = vadd.xlane.f32.xlu0 %v334
    %v336 = vpop.xlane.xlu0 %335
    %v337 = vsel %vm134, %v333, 0.0
    %338 = vadd.xlane.f32.xlu0 %v337
    %v339 = vpop.xlane.xlu0 %338
    %v340 = vrcp.pop 32.0
    %v341 = vmul.f32 32.0, %v340
    %v342 = vsub.f32 1.0, %v341
    %v343 = vmul.f32 %v340, %v342
    %v344 = vadd.f32 %v340, %v343
    %vm345 = vweird.f32 %v340
    %v346 = vsel %vm345, %v340, %v344
    %v347 = vmul.f32 %v336, %v346
    %v348 = vmul.f32 %v339, %v346
    %v349 = vsub.f32 %v332, %v347
    %v350 = vsub.f32 %v333, %v348
    %v351 = vmul.f32 %v349, %v349
    %v352 = vmul.f32 %v350, %v350
    %v353 = vsel %vm134, %v351, 0.0
    %354 = vadd.xlane.f32.xlu0 %v353
    %v355 = vpop.xlane.xlu0 %354
    %v356 = vsel %vm134, %v352, 0.0
    %357 = vadd.xlane.f32.xlu0 %v356
    %v358 = vpop.xlane.xlu0 %357
    %v359 = vmul.f32 %v355, %v346
    %v360 = vmul.f32 %v358, %v346
    %v361 = vadd.f32 %v359, 1e-05
    %v362 = vadd.f32 %v360, 1e-05
    %v363 = vrsqrt.pop %v361
    %v364 = vmul.f32 %v363, %v361
    %v365 = vmul.f32 %v364, %v363
    %v366 = vmul.f32 0.5, %v365
    %v367 = vsub.f32 1.5, %v366
    %v368 = vmul.f32 %v363, %v367
    %vm369 = vweird.f32 %v361
    %vm370 = vweird.f32 %v363
    %vm371 = vmor %vm369, %vm370
    %v372 = vsel %vm371, %v363, %v368
    %v373 = vrsqrt.pop %v362
    %v374 = vmul.f32 %v373, %v362
    %v375 = vmul.f32 %v374, %v373
    %v376 = vmul.f32 0.5, %v375
    %v377 = vsub.f32 1.5, %v376
    %v378 = vmul.f32 %v373, %v377
    %vm379 = vweird.f32 %v362
    %vm380 = vweird.f32 %v373
    %vm381 = vmor %vm379, %vm380
    %v382 = vsel %vm381, %v373, %v378
    %v383 = vmul.f32 %v349, %v372
    %v384 = vmul.f32 %v350, %v382
    %v385 = vld [vmem:[%s5] sm:$0x1]
    %v386 = vperm.slane %v385, 0
    %v387 = vmul.f32 %v383, %v386
    %v388 = vmul.f32 %v384, %v386
    %v389 = vld [vmem:[%s5 + $0x1] sm:$0x1]
    %v390 = vperm.slane %v389, 0
    %v391 = vadd.f32 %v387, %v390
    %v392 = vadd.f32 %v388, %v390
    %393 = vst.msk [vmem:[#allocation11] sm:$0xff] %vm134, %v391
    %394 = vst.msk [vmem:[#allocation11 + $0x8] sm:$0xff] %vm134, %v392
    // Predicated region
    $region46: #{mag_forward.1} parent=1 // pred_check
      _
    $region47: #{mag_forward.1} parent=1 // pred_check_branch
      %396 = sbr.rel (0) target = $region49
    $region48: #{mag_forward.1} parent=1 // pred_region
      %398 = vsyncadd [#allocation5], 0
      %s399 = sshll.u32 [#allocation11], 4
      %s400 = int_to_ptr.vmem [resolvable:$true] %s399
      %s401 = sshll.u32 %s7, 4
      %s402 = int_to_ptr.hbm [resolvable:$true] %s401
      %407 = dma.vmem_to_hbm [thread:$0]  %s400, 256, %s402, [#allocation5], 128, 128, 8
    $region49: #{mag_forward.1} parent=1 // pred_fallthru
      _
    // Predicated region
    $region50: #{mag_forward.1} parent=1 // pred_check
      _
    $region51: #{mag_forward.1} parent=1 // pred_check_branch
      %409 = sbr.rel (0) target = $region53
    $region52: #{mag_forward.1} parent=1 // pred_region
      %411 = dma.done [#allocation5], 256
    $region53: #{mag_forward.1} parent=1 // pred_fallthru
      _
    %412 = vsyncpa [#allocation4], 1
    %413 = vsyncpa [#allocation7], 1
    %414 = vsyncpa [#allocation10], 1
    %415 = vsyncpa [#allocation5], 1

</llo_original>
